<compile_context>
chip_gen: v7x
topology: tpu7x:2x2x1
jax: 0.10.0
libtpu: 0.0.40
codegen_flags: <defaults>
</compile_context>

<pallas_src>
import jax
import jax.numpy as jnp
from jax.experimental import pallas as pl
from jax.experimental.pallas import tpu as pltpu


def _round_up(a, b):
    return ((a + b - 1) // b) * b


# ---------------------------------------------------------------------------
# Pass 1: per-tile partial sums of y = x @ W and y*y (batch-norm statistics).
# Each grid step writes its own (1, 2, cout) partial block -> fully parallel.
# ---------------------------------------------------------------------------
def _linear_stats_kernel(x_ref, w_ref, stats_ref):
    y = jnp.dot(x_ref[...], w_ref[...], preferred_element_type=jnp.float32)
    s = jnp.sum(y, axis=0, keepdims=True)        # (1, cout)
    sq = jnp.sum(y * y, axis=0, keepdims=True)   # (1, cout)
    stats_ref[...] = jnp.concatenate([s, sq], axis=0)[None]   # (1, 2, cout)


# ---------------------------------------------------------------------------
# Pass 2: recompute y = x @ W, apply hoisted BN scale/shift, ReLU.
# ---------------------------------------------------------------------------
def _linear_bn_relu_kernel(x_ref, w_ref, scale_ref, shift_ref, o_ref):
    y = jnp.dot(x_ref[...], w_ref[...], preferred_element_type=jnp.float32)
    o_ref[...] = jnp.maximum(y * scale_ref[...] + shift_ref[...], 0.0)


# ---------------------------------------------------------------------------
# Wrapper
# ---------------------------------------------------------------------------
def fcn_forward(x, weight, bias, gamma, beta, *, eps=1e-5, tile_n=2048):
    """x: (kk, t, cin). weight: (cout, cin). Returns (kk, t, cout) float32."""
    # Training-mode BatchNorm cancels a per-channel constant added before it,
    # so the linear bias never affects the output (mean-subtraction); unused.
    del bias

    kk, t, cin = x.shape
    cout = weight.shape[0]
    n = kk * t
    f32 = jnp.float32

    # ---- N tiling: large tiles; even block count (when >1) for v7x 2-TC ----
    tn = min(tile_n, _round_up(n, 8))
    num_blocks = -(-n // tn)
    if num_blocks > 1 and num_blocks % 2 == 1:
        num_blocks += 1
        tn = _round_up(-(-n // num_blocks), 8)
    n_p = _round_up(n, tn)
    num_blocks = n_p // tn
    grid = (num_blocks,)

    # ---- inputs: only N padding, no channel padding, no 128-lane x copy ----
    x2 = x.reshape(n, cin).astype(f32)
    if n_p != n:
        # Zero rows contribute 0 to both stat sums; we divide by the true n.
        x2 = jnp.pad(x2, ((0, n_p - n), (0, 0)))
    w_t = weight.T.astype(f32)                     # (cin, cout)

    # ---- right-sized VMEM limit from the actual (double-buffered) tiles ----
    bpe = 4
    x_tile_b = tn * cin * bpe
    w_b = cin * cout * bpe
    o_tile_b = tn * cout * bpe
    small_b = 4 * cout * bpe                       # stats / scale / shift
    working = 2 * (x_tile_b + w_b + max(o_tile_b, small_b) + small_b)
    vmem_limit = int(min(max(3 * working, 8 * 1024 * 1024), 32 * 1024 * 1024))

    cparams = pltpu.CompilerParams(
        dimension_semantics=("parallel",),
        vmem_limit_bytes=vmem_limit,
    )

    flops = 2 * n_p * cin * cout
    ce_stats = pl.CostEstimate(
        flops=flops, transcendentals=0,
        bytes_accessed=(n_p * cin + cin * cout + num_blocks * 2 * cout) * bpe)
    ce_main = pl.CostEstimate(
        flops=flops, transcendentals=0,
        bytes_accessed=(n_p * cin + cin * cout + 2 * cout + n_p * cout) * bpe)

    # ---- pass 1: per-block partial stats (single packed output) ------------
    stats = pl.pallas_call(
        _linear_stats_kernel,
        out_shape=jax.ShapeDtypeStruct((num_blocks, 2, cout), f32),
        grid_spec=pltpu.PrefetchScalarGridSpec(
            num_scalar_prefetch=0,
            grid=grid,
            in_specs=[
                pl.BlockSpec((tn, cin), lambda i: (i, 0)),
                pl.BlockSpec((cin, cout), lambda i: (0, 0)),
            ],
            out_specs=pl.BlockSpec((1, 2, cout), lambda i: (i, 0, 0)),
        ),
        compiler_params=cparams,
        cost_estimate=ce_stats,
    )(x2, w_t)

    # ---- tiny JAX reduction + BN constant hoisting --------------------------
    stats = jnp.sum(stats, axis=0)                  # (2, cout)
    mean = stats[0] / n
    var = jnp.maximum(stats[1] / n - mean * mean, 0.0)   # cancellation guard
    inv = jax.lax.rsqrt(var + eps)
    g = gamma.astype(f32)
    scale = (g * inv).reshape(1, cout)
    shift = (beta.astype(f32) - mean * g * inv).reshape(1, cout)

    # ---- pass 2: fused linear + BN(scale, shift) + ReLU, un-padded output ---
    out = pl.pallas_call(
        _linear_bn_relu_kernel,
        out_shape=jax.ShapeDtypeStruct((n_p, cout), f32),
        grid_spec=pltpu.PrefetchScalarGridSpec(
            num_scalar_prefetch=0,
            grid=grid,
            in_specs=[
                pl.BlockSpec((tn, cin), lambda i: (i, 0)),
                pl.BlockSpec((cin, cout), lambda i: (0, 0)),
                pl.BlockSpec((1, cout), lambda i: (0, 0)),
                pl.BlockSpec((1, cout), lambda i: (0, 0)),
            ],
            out_specs=pl.BlockSpec((tn, cout), lambda i: (i, 0)),
        ),
        compiler_params=cparams,
        cost_estimate=ce_main,
    )(x2, w_t, scale, shift)

    if n_p != n:
        out = out[:n]
    return out.reshape(kk, t, cout)


# ---------------------------------------------------------------------------
# Reference (plain JAX) for verification
# ---------------------------------------------------------------------------
def fcn_reference(x, weight, bias, gamma, beta, eps=1e-5):
    kk, t, cin = x.shape
    y = x.reshape(kk * t, cin) @ weight.T + bias
    mean = y.mean(axis=0, keepdims=True)
    var = ((y - mean) ** 2).mean(axis=0, keepdims=True)  # biased, training mode
    y = gamma * (y - mean) / jnp.sqrt(var + eps) + beta
    return jnp.maximum(y, 0.0).reshape(kk, t, -1)


if __name__ == "__main__":
    kk, t, cin, cout = 2, 8, 4, 32    # small shapes: N = kk*t = 16

    key = jax.random.PRNGKey(0)
    kx, kw, kb = jax.random.split(key, 3)

    x = jax.random.normal(kx, (kk, t, cin), dtype=jnp.float32)

    # Deterministic parameter init (mimics nn.Linear's uniform(-1/sqrt(cin), ..)).
    bound = 1.0 / (cin ** 0.5)
    weight = jax.random.uniform(kw, (cout, cin), jnp.float32, -bound, bound)
    bias = jax.random.uniform(kb, (cout,), jnp.float32, -bound, bound)
    gamma = jnp.ones((cout,), jnp.float32)    # BatchNorm1d weight
    beta = jnp.zeros((cout,), jnp.float32)    # BatchNorm1d bias

    out = fcn_forward(x, weight, bias, gamma, beta)
    out = jax.block_until_ready(out)

    ref = fcn_reference(x, weight, bias, gamma, beta)
    assert out.shape == (kk, t, cout)
    assert jnp.allclose(out, ref, atol=1e-4, rtol=1e-4), "mismatch vs reference"

    print("KERNEL_OK")
</pallas_src>

<mosaic_0001>
module attributes {stable_mosaic.version = 11 : i64} {
  func.func @_linear_stats_kernel(%arg0: i32, %arg1: memref<16x4xf32, #tpu.memory_space<vmem>>, %arg2: memref<4x32xf32, #tpu.memory_space<vmem>>, %arg3: memref<1x2x32xf32, #tpu.memory_space<vmem>>) attributes {dimension_semantics = [#tpu.dimension_semantics<parallel>], iteration_bounds = array<i64: 1>, scalar_prefetch = 0 : i64, scratch_operands = 0 : i64, tpu.core_type = #tpu.core_type<tc>, window_params = [{transform_indices = @transform_0, window_bounds = array<i64: 16, 4>}, {pipeline_mode = #tpu.pipeline_mode<synchronous>, transform_indices = @transform_1, window_bounds = array<i64: 4, 32>}, {transform_indices = @transform_2, window_bounds = array<i64: 1, 2, 32>}]} {
    %c0 = arith.constant 0 : index
    %c0_0 = arith.constant 0 : index
    %0 = vector.load %arg1[%c0, %c0_0] : memref<16x4xf32, #tpu.memory_space<vmem>>, vector<16x4xf32>
    %c0_1 = arith.constant 0 : index
    %c0_2 = arith.constant 0 : index
    %1 = vector.load %arg2[%c0_1, %c0_2] : memref<4x32xf32, #tpu.memory_space<vmem>>, vector<4x32xf32>
    %cst = arith.constant dense<0.000000e+00> : vector<16x32xf32>
    %2 = tpu.matmul %0, %1, %cst {dimension_numbers = #tpu.dot_dimension_numbers<[1], [0], [0], [1], [0, 0, 1, 1], [], []>} : vector<16x4xf32>, vector<4x32xf32>, vector<16x32xf32> -> vector<16x32xf32>
    %cst_3 = arith.constant dense<0.000000e+00> : vector<32xf32>
    %3 = vector.multi_reduction <add>, %2, %cst_3 [0] : vector<16x32xf32> to vector<32xf32>
    %4 = vector.shape_cast %3 : vector<32xf32> to vector<1x32xf32>
    %5 = arith.mulf %2, %2 : vector<16x32xf32>
    %cst_4 = arith.constant dense<0.000000e+00> : vector<32xf32>
    %6 = vector.multi_reduction <add>, %5, %cst_4 [0] : vector<16x32xf32> to vector<32xf32>
    %7 = vector.shape_cast %6 : vector<32xf32> to vector<1x32xf32>
    %8 = tpu.concatenate %4, %7 in 0 : vector<1x32xf32>, vector<1x32xf32> -> vector<2x32xf32>
    %9 = vector.shape_cast %8 : vector<2x32xf32> to vector<1x2x32xf32>
    %c0_5 = arith.constant 0 : index
    %c0_6 = arith.constant 0 : index
    %c0_7 = arith.constant 0 : index
    %10 = vector.load %arg3[%c0_5, %c0_6, %c0_7] : memref<1x2x32xf32, #tpu.memory_space<vmem>>, vector<1x2x32xf32>
    tpu.vector_store %arg3[%c0_5, %c0_6, %c0_7], %9 {strides = array<i32>} : memref<1x2x32xf32, #tpu.memory_space<vmem>>, vector<1x2x32xf32>,
    return
  }
  func.func @transform_0(%arg0: i32) -> (i32, i32) {
    %c0_i32 = arith.constant 0 : i32
    %c0_i32_0 = arith.constant 0 : i32
    return %arg0, %c0_i32 : i32, i32
  }
  func.func @transform_1(%arg0: i32) -> (i32, i32) {
    %c0_i32 = arith.constant 0 : i32
    %c0_i32_0 = arith.constant 0 : i32
    %c0_i32_1 = arith.constant 0 : i32
    return %c0_i32, %c0_i32_0 : i32, i32
  }
  func.func @transform_2(%arg0: i32) -> (i32, i32, i32) {
    %c0_i32 = arith.constant 0 : i32
    %c0_i32_0 = arith.constant 0 : i32
    %c0_i32_1 = arith.constant 0 : i32
    return %arg0, %c0_i32, %c0_i32_0 : i32, i32, i32
  }
}

</mosaic_0001>

<llo_original>
// kernel: tpu_custom_call.1
$region0: #{tpu_custom_call.1}
  #allocation0 [shape = 'u32[]', space=smem, size = 0x4, offset = 0x4, fixed_abs, tag = 'smem constant byte address 0x4 - core index']
  #allocation1 [shape = 'u32[144,128]{1,0:T(1,128)}', space=vmem, size = 0x12000, scoped, tag = 'internal scratch']
  %s0 = inlined_call_operand.vmem [shape: f32[16,4], index: 0, kind: input, shape index: {}]
  %s1 = inlined_call_operand.vmem [shape: f32[4,32], index: 1, kind: input, shape index: {}]
  %s2 = inlined_call_operand.hbm [shape: f32[1,2,32], index: 2, kind: output, shape index: {}]
  %s3 = sld [smem:[#allocation0]]
  $region18: #{tpu_custom_call.1} parent=0
    _
  %s5 = ssub.s32 1, %s3
  %s6 = scalar_select 0, %s5, %s3
  $region1: #{tpu_custom_call.1} parent=0
    #allocation2 [shape = 'u8[1024]{0}', space=vmem, size = 0x400, scoped, tag = 'output window, operand 0, single buffered']
    #allocation3 [shape = 's32[1]{0}', space=sflag, size = 0x4, scoped, tag = 'scoped memory for tpu_custom_call.1']
    %7 = vsyncpa [#allocation3], 0
    // Predicated region
    $region2: #{tpu_custom_call.1} parent=1 // pred_check
      _
    $region3: #{tpu_custom_call.1} parent=1 // pred_check_branch
      %9 = sbr.rel (0) target = $region5
    $region4: #{tpu_custom_call.1} parent=1 // pred_region
      _
    $region5: #{tpu_custom_call.1} parent=1 // pred_fallthru
      _
    // Predicated region
    $region6: #{tpu_custom_call.1} parent=1 // pred_check
      _
    $region7: #{tpu_custom_call.1} parent=1 // pred_check_branch
      %11 = sbr.rel (0) target = $region9
    $region8: #{tpu_custom_call.1} parent=1 // pred_region
      _
    $region9: #{tpu_custom_call.1} parent=1 // pred_fallthru
      _
    %v12 = vld [vmem:[%s0] sm:$0xff]
    %v13 = vld [vmem:[%s0 + $0x8] sm:$0xff]
    %v14 = vld [vmem:[%s1] sm:$0xf]
    %vm15 = vcmask 31744
    %v17 = vsel %vm15, %v12, 0
    %v20 = vsel %vm15, %v13, 0
    %vm22 = vcmask 1043456
    %v24 = vsel %vm22, %v14, 0
    %26 = vmatprep.subr.mxu0 0.0
    %27 = vmatpush1.msra.mxu0 %v24
    %28 = vmatprep.subr.mxu0 0.0
    %29 = vmatpush1.msra.mxu0 0.0
    %30 = vmatprep.subr.mxu0 0.0
    %31 = vmatpush1.msra.mxu0 0.0
    %32 = vmatprep.subr.mxu0 0.0
    %33 = vmatpush1.msra.mxu0 0.0
    %34 = vmatprep.subr.mxu0 0.0
    %35 = vmatpush1.msra.mxu0 0.0
    %36 = vmatprep.subr.mxu0 0.0
    %37 = vmatpush1.msra.mxu0 0.0
    %38 = vmatprep.subr.mxu0 0.0
    %39 = vmatpush1.msra.mxu0 0.0
    %40 = vmatprep.subr.mxu0 0.0
    %41 = vmatpush1.msra.mxu0 0.0
    %42 = vmatprep.subr.mxu0 0.0
    %43 = vmatpush1.msra.mxu0 0.0
    %44 = vmatprep.subr.mxu0 0.0
    %45 = vmatpush1.msra.mxu0 0.0
    %46 = vmatprep.subr.mxu0 0.0
    %47 = vmatpush1.msra.mxu0 0.0
    %48 = vmatprep.subr.mxu0 0.0
    %49 = vmatpush1.msra.mxu0 0.0
    %50 = vmatprep.subr.mxu0 0.0
    %51 = vmatpush1.msra.mxu0 0.0
    %52 = vmatprep.subr.mxu0 0.0
    %53 = vmatpush1.msra.mxu0 0.0
    %54 = vmatprep.subr.mxu0 0.0
    %55 = vmatpush1.msra.mxu0 0.0
    %56 = vmatprep.subr.mxu0 0.0
    %57 = vmatpush1.msra.mxu0 0.0
    %58 = vmatprep.subr.mxu0 0.0
    %59 = vmatpush1.msra.mxu0 0.0
    %60 = vmatprep.subr.mxu0 0.0
    %61 = vmatpush1.msra.mxu0 0.0
    %62 = vmatprep.subr.mxu0 0.0
    %63 = vmatpush1.msra.mxu0 0.0
    %64 = vmatprep.subr.mxu0 0.0
    %65 = vmatpush1.msra.mxu0 0.0
    %66 = vmatprep.subr.mxu0 0.0
    %67 = vmatpush1.msra.mxu0 0.0
    %68 = vmatprep.subr.mxu0 0.0
    %69 = vmatpush1.msra.mxu0 0.0
    %70 = vmatprep.subr.mxu0 0.0
    %71 = vmatpush1.msra.mxu0 0.0
    %72 = vmatprep.subr.mxu0 0.0
    %73 = vmatpush1.msra.mxu0 0.0
    %74 = vmatprep.subr.mxu0 0.0
    %75 = vmatpush1.msra.mxu0 0.0
    %76 = vmatprep.subr.mxu0 0.0
    %77 = vmatpush1.msra.mxu0 0.0
    %78 = vmatprep.subr.mxu0 0.0
    %79 = vmatpush1.msra.mxu0 0.0
    %80 = vmatprep.subr.mxu0 0.0
    %81 = vmatpush1.msra.mxu0 0.0
    %82 = vmatprep.subr.mxu0 0.0
    %83 = vmatpush1.msra.mxu0 0.0
    %84 = vmatprep.subr.mxu0 0.0
    %85 = vmatpush1.msra.mxu0 0.0
    %86 = vmatprep.subr.mxu0 0.0
    %87 = vmatpush1.msra.mxu0 0.0
    %88 = vmatprep.subr.mxu0 0.0
    %89 = vmatpush1.msra.mxu0 0.0
    %90 = vmatprep.mubr.f32.mxu0 0.0
    %91 = vmatmul.mubr.f32.gmra.mrb[0].mxu0 %v17
    %v92 = vpop.f32.mrb[0].mxu0
    %v93 = vadd.f32 0.0, %v92
    %v94 = vpop.f32.mrb[0].mxu0
    %95 = vmatprep.mubr.f32.mxu0 0.0
    %96 = vmatmul.mubr.f32.gmra.mrb[0].mxu0 %v20
    %v97 = vpop.f32.mrb[0].mxu0
    %v98 = vadd.f32 0.0, %v97
    %v99 = vpop.f32.mrb[0].mxu0
    %100 = vdwg.mxu0
    %vm101 = vcmask 261120
    %v102 = vsel %vm101, %v93, 0.0
    %v103 = vsel %vm101, %v98, 0.0
    %v104 = vadd.f32 %v102, %v103
    %v105 = vrot.slane %v104, 4
    %v106 = vadd.f32 %v104, %v105
    %v107 = vrot.slane %v106, 2
    %v108 = vadd.f32 %v106, %v107
    %v109 = vrot.slane %v108, 1
    %v110 = vadd.f32 %v108, %v109
    %v111 = vmul.f32 %v93, %v93
    %v112 = vmul.f32 %v98, %v98
    %v113 = vsel %vm101, %v111, 0.0
    %v114 = vsel %vm101, %v112, 0.0
    %v115 = vadd.f32 %v113, %v114
    %v116 = vrot.slane %v115, 4
    %v117 = vadd.f32 %v115, %v116
    %v118 = vrot.slane %v117, 2
    %v119 = vadd.f32 %v117, %v118
    %v120 = vrot.slane %v119, 1
    %v121 = vadd.f32 %v119, %v120
    %vm122 = vcmask 1040384
    %v123 = vsel %vm122, %v110, %v121
    %vm124 = vcmask 254976
    %125 = vst.msk [vmem:[#allocation2] sm:$0x3] %vm124, %v123
    // Predicated region
    $region10: #{tpu_custom_call.1} parent=1 // pred_check
      _
    $region11: #{tpu_custom_call.1} parent=1 // pred_check_branch
      %127 = sbr.rel (0) target = $region13
    $region12: #{tpu_custom_call.1} parent=1 // pred_region
      %s129 = ssub.s32 32, 32
      %130 = vsyncadd [#allocation3], %s129
      %s132 = sshll.u32 [#allocation2], 4
      %s133 = int_to_ptr.vmem [resolvable:$true] %s132
      %135 = dma.vmem_to_hbm [thread:$0]  %s133, 32, %s2, [#allocation3]
    $region13: #{tpu_custom_call.1} parent=1 // pred_fallthru
      _
    // Predicated region
    $region14: #{tpu_custom_call.1} parent=1 // pred_check
      _
    $region15: #{tpu_custom_call.1} parent=1 // pred_check_branch
      %137 = sbr.rel (0) target = $region17
    $region16: #{tpu_custom_call.1} parent=1 // pred_region
      %138 = dma.done [#allocation3], 32
    $region17: #{tpu_custom_call.1} parent=1 // pred_fallthru
      _
    %139 = vsyncpa [#allocation3], 1

</llo_original>
